<compile_context>
chip_gen: v5e
topology: v5e:2x2
jax: 0.10.0
libtpu: 0.0.40
codegen_flags: <defaults>
</compile_context>

<pallas_src>
import functools

import jax
import jax.numpy as jnp
import numpy as np
from jax.experimental import pallas as pl
from jax.experimental.pallas import tpu as pltpu


def _round_up(x: int, m: int) -> int:
    return ((x + m - 1) // m) * m


def _fused_gcn2l_kernel(adj_ref, x_ref, w1_ref, b1_ref, mask_ref, w2_ref, b2_ref, out_ref):
    """Fused 2-layer GraphConv: both layers computed in one kernel, h1 stays on-chip."""
    # ---- layer 1: feature transform + neighborhood aggregation (MXU) ----
    xw = jnp.dot(x_ref[...], w1_ref[...], preferred_element_type=jnp.float32)
    h1 = jnp.dot(adj_ref[...], xw, preferred_element_type=jnp.float32) + b1_ref[...]
    h1 = jnp.maximum(h1, 0.0)                       # relu
    h1 = h1 * mask_ref[...]                         # dropout (mask already scaled by 1/(1-p))

    # ---- layer 2 ----
    hw = jnp.dot(h1, w2_ref[...], preferred_element_type=jnp.float32)
    h2 = jnp.dot(adj_ref[...], hw, preferred_element_type=jnp.float32) + b2_ref[...]
    out_ref[...] = jax.nn.sigmoid(h2).astype(out_ref.dtype)


@jax.jit
def gcn_2l_forward(adj, x, w1, b1, w2, b2, drop_mask):
    """Fused 2-layer GCN forward.

    adj:       (N, N)   symmetric-normalized adjacency
    x:         (N, F_in)
    w1, b1:    (F_in, H), (1, H)
    w2, b2:    (H, C),   (1, C)
    drop_mask: (N, H)  keep-mask / (1-p)  (ones => no dropout)
    returns:   (N, C)
    """
    n = adj.shape[0]
    f_in = x.shape[1]
    hidden = w1.shape[1]
    n_cls = w2.shape[1]

    # lane-dense padding: last dims -> multiples of 128, node dim -> multiple of 8
    n_p = _round_up(n, 8)
    f_p = _round_up(f_in, 128)
    h_p = _round_up(hidden, 128)
    c_p = _round_up(n_cls, 128)

    adj_p = jnp.pad(adj, ((0, n_p - n), (0, n_p - n)))
    x_p = jnp.pad(x, ((0, n_p - n), (0, f_p - f_in)))
    w1_p = jnp.pad(w1, ((0, f_p - f_in), (0, h_p - hidden)))
    b1_p = jnp.pad(b1, ((0, 0), (0, h_p - hidden)))
    mask_p = jnp.pad(drop_mask, ((0, n_p - n), (0, h_p - hidden)))
    w2_p = jnp.pad(w2, ((0, h_p - hidden), (0, c_p - n_cls)))
    b2_p = jnp.pad(b2, ((0, 0), (0, c_p - n_cls)))

    flops = 2 * (n_p * f_p * h_p + n_p * n_p * h_p + n_p * h_p * c_p + n_p * n_p * c_p)
    bytes_accessed = 4 * (
        adj_p.size + x_p.size + w1_p.size + b1_p.size
        + mask_p.size + w2_p.size + b2_p.size + n_p * c_p
    )

    out_p = pl.pallas_call(
        _fused_gcn2l_kernel,
        out_shape=jax.ShapeDtypeStruct((n_p, c_p), jnp.float32),
        in_specs=[
            pl.BlockSpec(memory_space=pltpu.MemorySpace.VMEM),  # adj
            pl.BlockSpec(memory_space=pltpu.MemorySpace.VMEM),  # x
            pl.BlockSpec(memory_space=pltpu.MemorySpace.VMEM),  # w1
            pl.BlockSpec(memory_space=pltpu.MemorySpace.VMEM),  # b1
            pl.BlockSpec(memory_space=pltpu.MemorySpace.VMEM),  # dropout mask
            pl.BlockSpec(memory_space=pltpu.MemorySpace.VMEM),  # w2
            pl.BlockSpec(memory_space=pltpu.MemorySpace.VMEM),  # b2
        ],
        out_specs=pl.BlockSpec(memory_space=pltpu.MemorySpace.VMEM),
        cost_estimate=pl.CostEstimate(
            flops=flops,
            transcendentals=n_p * c_p,
            bytes_accessed=bytes_accessed,
        ),
    )(adj_p, x_p, w1_p, b1_p, mask_p, w2_p, b2_p)

    return out_p[:n, :n_cls]


def make_dropout_mask(key, shape, p):
    """F.dropout(training=True) mask: Bernoulli(1-p) keep, inverted scaling."""
    if p <= 0.0:
        return jnp.ones(shape, dtype=jnp.float32)
    keep = jax.random.bernoulli(key, 1.0 - p, shape).astype(jnp.float32)
    return keep * jnp.float32(1.0 / (1.0 - p))


def build_normalized_adjacency(n_nodes):
    """Deterministic undirected graph (ring + chords), DGL norm='both'."""
    a = np.zeros((n_nodes, n_nodes), dtype=np.float32)
    for i in range(n_nodes):
        a[i, (i + 1) % n_nodes] = 1.0
        a[(i + 1) % n_nodes, i] = 1.0
        a[i, (i + 5) % n_nodes] = 1.0
        a[(i + 5) % n_nodes, i] = 1.0
    deg = np.clip(a.sum(axis=1), 1.0, None)
    d_inv_sqrt = 1.0 / np.sqrt(deg)
    a_hat = a * d_inv_sqrt[:, None] * d_inv_sqrt[None, :]
    return jnp.asarray(a_hat, dtype=jnp.float32)


if __name__ == "__main__":
    # small shapes consistent with the module
    N_NODES = 32       # graph size
    IN_FEATS = 16      # in_feats
    HIDDEN = 32        # hidden_size
    N_CLASSES = 4      # number_classes
    DROPOUT = 0.1

    key = jax.random.PRNGKey(0)
    k_x, k_w1, k_w2, k_drop = jax.random.split(key, 4)

    x = jax.random.normal(k_x, (N_NODES, IN_FEATS), dtype=jnp.float32)

    # deterministic Glorot-style init (GraphConv weight (F_in, F_out), bias zeros)
    w1 = jax.random.normal(k_w1, (IN_FEATS, HIDDEN), dtype=jnp.float32) * (
        1.0 / np.sqrt(IN_FEATS)
    )
    b1 = jnp.zeros((1, HIDDEN), dtype=jnp.float32)
    w2 = jax.random.normal(k_w2, (HIDDEN, N_CLASSES), dtype=jnp.float32) * (
        1.0 / np.sqrt(HIDDEN)
    )
    b2 = jnp.zeros((1, N_CLASSES), dtype=jnp.float32)

    adj = build_normalized_adjacency(N_NODES)

    # ---- correctness check, dropout disabled ----
    ones_mask = jnp.ones((N_NODES, HIDDEN), dtype=jnp.float32)
    out_nodrop = jax.block_until_ready(
        gcn_2l_forward(adj, x, w1, b1, w2, b2, ones_mask)
    )
    ref = jax.nn.sigmoid(
        adj @ (jnp.maximum(adj @ (x @ w1) + b1, 0.0) @ w2) + b2
    )
    np.testing.assert_allclose(np.asarray(out_nodrop), np.asarray(ref),
                               rtol=1e-5, atol=1e-5)

    # ---- full forward with dropout (same mask applied to the pure-JAX reference) ----
    mask = make_dropout_mask(k_drop, (N_NODES, HIDDEN), DROPOUT)
    out = jax.block_until_ready(gcn_2l_forward(adj, x, w1, b1, w2, b2, mask))
    assert out.shape == (N_NODES, N_CLASSES)
    ref_drop = jax.nn.sigmoid(
        adj @ ((jnp.maximum(adj @ (x @ w1) + b1, 0.0) * mask) @ w2) + b2
    )
    np.testing.assert_allclose(np.asarray(out), np.asarray(ref_drop),
                               rtol=1e-5, atol=1e-5)

    print("KERNEL_OK")
</pallas_src>

<mosaic_0001>
module attributes {stable_mosaic.version = 11 : i64} {
  func.func @_fused_gcn2l_kernel(%arg0: memref<32x32xf32, #tpu.memory_space<vmem>>, %arg1: memref<32x128xf32, #tpu.memory_space<vmem>>, %arg2: memref<128x128xf32, #tpu.memory_space<vmem>>, %arg3: memref<1x128xf32, #tpu.memory_space<vmem>>, %arg4: memref<32x128xf32, #tpu.memory_space<vmem>>, %arg5: memref<128x128xf32, #tpu.memory_space<vmem>>, %arg6: memref<1x128xf32, #tpu.memory_space<vmem>>, %arg7: memref<32x128xf32, #tpu.memory_space<vmem>>) attributes {dimension_semantics = [], scalar_prefetch = 0 : i64, scratch_operands = 0 : i64, tpu.core_type = #tpu.core_type<tc>} {
    %c0 = arith.constant 0 : index
    %c0_0 = arith.constant 0 : index
    %0 = vector.load %arg1[%c0, %c0_0] : memref<32x128xf32, #tpu.memory_space<vmem>>, vector<32x128xf32>
    %c0_1 = arith.constant 0 : index
    %c0_2 = arith.constant 0 : index
    %1 = vector.load %arg2[%c0_1, %c0_2] : memref<128x128xf32, #tpu.memory_space<vmem>>, vector<128x128xf32>
    %cst = arith.constant dense<0.000000e+00> : vector<32x128xf32>
    %2 = tpu.matmul %0, %1, %cst {dimension_numbers = #tpu.dot_dimension_numbers<[1], [0], [0], [1], [0, 0, 1, 1], [], []>} : vector<32x128xf32>, vector<128x128xf32>, vector<32x128xf32> -> vector<32x128xf32>
    %c0_3 = arith.constant 0 : index
    %c0_4 = arith.constant 0 : index
    %3 = vector.load %arg0[%c0_3, %c0_4] : memref<32x32xf32, #tpu.memory_space<vmem>>, vector<32x32xf32>
    %cst_5 = arith.constant dense<0.000000e+00> : vector<32x128xf32>
    %4 = tpu.matmul %3, %2, %cst_5 {dimension_numbers = #tpu.dot_dimension_numbers<[1], [0], [0], [1], [0, 0, 1, 1], [], []>} : vector<32x32xf32>, vector<32x128xf32>, vector<32x128xf32> -> vector<32x128xf32>
    %c0_6 = arith.constant 0 : index
    %c0_7 = arith.constant 0 : index
    %5 = vector.load %arg3[%c0_6, %c0_7] : memref<1x128xf32, #tpu.memory_space<vmem>>, vector<1x128xf32>
    %6 = vector.broadcast %5 : vector<1x128xf32> to vector<32x128xf32>
    %7 = arith.addf %4, %6 : vector<32x128xf32>
    %cst_8 = arith.constant 0.000000e+00 : f32
    %8 = vector.broadcast %cst_8 : f32 to vector<32x128xf32>
    %9 = arith.maximumf %7, %8 : vector<32x128xf32>
    %c0_9 = arith.constant 0 : index
    %c0_10 = arith.constant 0 : index
    %10 = vector.load %arg4[%c0_9, %c0_10] : memref<32x128xf32, #tpu.memory_space<vmem>>, vector<32x128xf32>
    %11 = arith.mulf %9, %10 : vector<32x128xf32>
    %c0_11 = arith.constant 0 : index
    %c0_12 = arith.constant 0 : index
    %12 = vector.load %arg5[%c0_11, %c0_12] : memref<128x128xf32, #tpu.memory_space<vmem>>, vector<128x128xf32>
    %cst_13 = arith.constant dense<0.000000e+00> : vector<32x128xf32>
    %13 = tpu.matmul %11, %12, %cst_13 {dimension_numbers = #tpu.dot_dimension_numbers<[1], [0], [0], [1], [0, 0, 1, 1], [], []>} : vector<32x128xf32>, vector<128x128xf32>, vector<32x128xf32> -> vector<32x128xf32>
    %c0_14 = arith.constant 0 : index
    %c0_15 = arith.constant 0 : index
    %14 = vector.load %arg0[%c0_14, %c0_15] : memref<32x32xf32, #tpu.memory_space<vmem>>, vector<32x32xf32>
    %cst_16 = arith.constant dense<0.000000e+00> : vector<32x128xf32>
    %15 = tpu.matmul %14, %13, %cst_16 {dimension_numbers = #tpu.dot_dimension_numbers<[1], [0], [0], [1], [0, 0, 1, 1], [], []>} : vector<32x32xf32>, vector<32x128xf32>, vector<32x128xf32> -> vector<32x128xf32>
    %c0_17 = arith.constant 0 : index
    %c0_18 = arith.constant 0 : index
    %16 = vector.load %arg6[%c0_17, %c0_18] : memref<1x128xf32, #tpu.memory_space<vmem>>, vector<1x128xf32>
    %17 = vector.broadcast %16 : vector<1x128xf32> to vector<32x128xf32>
    %18 = arith.addf %15, %17 : vector<32x128xf32>
    %19 = arith.negf %18 : vector<32x128xf32>
    %20 = math.exp %19 : vector<32x128xf32>
    %cst_19 = arith.constant 1.000000e+00 : f32
    %21 = vector.broadcast %cst_19 : f32 to vector<32x128xf32>
    %22 = arith.addf %21, %20 : vector<32x128xf32>
    %23 = arith.divf %21, %22 : vector<32x128xf32>
    %c0_20 = arith.constant 0 : index
    %c0_21 = arith.constant 0 : index
    %24 = vector.load %arg7[%c0_20, %c0_21] : memref<32x128xf32, #tpu.memory_space<vmem>>, vector<32x128xf32>
    tpu.vector_store %arg7[%c0_20, %c0_21], %23 {strides = array<i32>} : memref<32x128xf32, #tpu.memory_space<vmem>>, vector<32x128xf32>,
    return
  }
}

</mosaic_0001>

<llo_original>
// kernel: gcn_2l_forward.1
$region0: #{gcn_2l_forward.1}
  #allocation0 [shape = 'u32[]', space=smem, size = 0x4, offset = 0x4, fixed_abs, tag = 'smem constant byte address 0x4 - core index']
  #allocation1 [shape = 'u32[72,128]{1,0:T(1,128)}', space=vmem, size = 0x9000, scoped, tag = 'internal scratch']
  %s0 = inlined_call_operand.vmem [shape: f32[32,32], index: 0, kind: input, shape index: {}]
  %s1 = inlined_call_operand.vmem [shape: f32[32,128], index: 1, kind: input, shape index: {}]
  %s2 = inlined_call_operand.vmem [shape: f32[128,128], index: 2, kind: input, shape index: {}]
  %s3 = inlined_call_operand.vmem [shape: f32[1,128], index: 3, kind: input, shape index: {}]
  %s4 = inlined_call_operand.vmem [shape: f32[32,128], index: 4, kind: input, shape index: {}]
  %s5 = inlined_call_operand.vmem [shape: f32[128,128], index: 5, kind: input, shape index: {}]
  %s6 = inlined_call_operand.vmem [shape: f32[1,128], index: 6, kind: input, shape index: {}]
  %s7 = inlined_call_operand.vmem [shape: f32[32,128], index: 7, kind: output, shape index: {}]
  %s8 = sld [smem:[#allocation0]]
  $region38: #{gcn_2l_forward.1} parent=0
    _
  %s10 = ssub.s32 1, %s8
  %s11 = scalar_select 0, %s10, %s8
  // Predicated region
  $region2: #{gcn_2l_forward.1} parent=0 // pred_check
    _
  $region3: #{gcn_2l_forward.1} parent=0 // pred_check_branch
    %13 = sbr.rel (0) target = $region5
  $region4: #{gcn_2l_forward.1} parent=0 // pred_region
    _
  $region5: #{gcn_2l_forward.1} parent=0 // pred_fallthru
    _
  // Predicated region
  $region6: #{gcn_2l_forward.1} parent=0 // pred_check
    _
  $region7: #{gcn_2l_forward.1} parent=0 // pred_check_branch
    %15 = sbr.rel (0) target = $region9
  $region8: #{gcn_2l_forward.1} parent=0 // pred_region
    _
  $region9: #{gcn_2l_forward.1} parent=0 // pred_fallthru
    _
  // Predicated region
  $region10: #{gcn_2l_forward.1} parent=0 // pred_check
    _
  $region11: #{gcn_2l_forward.1} parent=0 // pred_check_branch
    %17 = sbr.rel (0) target = $region13
  $region12: #{gcn_2l_forward.1} parent=0 // pred_region
    _
  $region13: #{gcn_2l_forward.1} parent=0 // pred_fallthru
    _
  // Predicated region
  $region14: #{gcn_2l_forward.1} parent=0 // pred_check
    _
  $region15: #{gcn_2l_forward.1} parent=0 // pred_check_branch
    %19 = sbr.rel (0) target = $region17
  $region16: #{gcn_2l_forward.1} parent=0 // pred_region
    _
  $region17: #{gcn_2l_forward.1} parent=0 // pred_fallthru
    _
  // Predicated region
  $region18: #{gcn_2l_forward.1} parent=0 // pred_check
    _
  $region19: #{gcn_2l_forward.1} parent=0 // pred_check_branch
    %21 = sbr.rel (0) target = $region21
  $region20: #{gcn_2l_forward.1} parent=0 // pred_region
    _
  $region21: #{gcn_2l_forward.1} parent=0 // pred_fallthru
    _
  // Predicated region
  $region22: #{gcn_2l_forward.1} parent=0 // pred_check
    _
  $region23: #{gcn_2l_forward.1} parent=0 // pred_check_branch
    %23 = sbr.rel (0) target = $region25
  $region24: #{gcn_2l_forward.1} parent=0 // pred_region
    _
  $region25: #{gcn_2l_forward.1} parent=0 // pred_fallthru
    _
  // Predicated region
  $region26: #{gcn_2l_forward.1} parent=0 // pred_check
    _
  $region27: #{gcn_2l_forward.1} parent=0 // pred_check_branch
    %25 = sbr.rel (0) target = $region29
  $region28: #{gcn_2l_forward.1} parent=0 // pred_region
    _
  $region29: #{gcn_2l_forward.1} parent=0 // pred_fallthru
    _
  %v26 = vld [vmem:[%s1] sm:$0xff]
  %v27 = vld [vmem:[%s1 + $0x8] sm:$0xff]
  %v28 = vld [vmem:[%s1 + $0x10] sm:$0xff]
  %v29 = vld [vmem:[%s1 + $0x18] sm:$0xff]
  %v30 = vld [vmem:[%s2] sm:$0xff]
  %v31 = vld [vmem:[%s2 + $0x8] sm:$0xff]
  %v32 = vld [vmem:[%s2 + $0x10] sm:$0xff]
  %v33 = vld [vmem:[%s2 + $0x18] sm:$0xff]
  %v34 = vld [vmem:[%s2 + $0x20] sm:$0xff]
  %v35 = vld [vmem:[%s2 + $0x28] sm:$0xff]
  %v36 = vld [vmem:[%s2 + $0x30] sm:$0xff]
  %v37 = vld [vmem:[%s2 + $0x38] sm:$0xff]
  %v38 = vld [vmem:[%s2 + $0x40] sm:$0xff]
  %v39 = vld [vmem:[%s2 + $0x48] sm:$0xff]
  %v40 = vld [vmem:[%s2 + $0x50] sm:$0xff]
  %v41 = vld [vmem:[%s2 + $0x58] sm:$0xff]
  %v42 = vld [vmem:[%s2 + $0x60] sm:$0xff]
  %v43 = vld [vmem:[%s2 + $0x68] sm:$0xff]
  %v44 = vld [vmem:[%s2 + $0x70] sm:$0xff]
  %v45 = vld [vmem:[%s2 + $0x78] sm:$0xff]
  %46 = vmatpush.msra.mxu0 %v45
  %47 = vmatpush.msra.mxu0 %v44
  %48 = vmatpush.msra.mxu0 %v43
  %49 = vmatpush.msra.mxu0 %v42
  %50 = vmatpush.msra.mxu0 %v41
  %51 = vmatpush.msra.mxu0 %v40
  %52 = vmatpush.msra.mxu0 %v39
  %53 = vmatpush.msra.mxu0 %v38
  %54 = vmatpush.msra.mxu0 %v37
  %55 = vmatpush.msra.mxu0 %v36
  %56 = vmatpush.msra.mxu0 %v35
  %57 = vmatpush.msra.mxu0 %v34
  %58 = vmatpush.msra.mxu0 %v33
  %59 = vmatpush.msra.mxu0 %v32
  %60 = vmatpush.msra.mxu0 %v31
  %61 = vmatpush.msra.mxu0 %v30
  %62 = vmatmul.f32.gmra.mxu0 %v26
  %v63 = vpop.f32.mrf.mxu0
  %v64 = vadd.f32 0.0, %v63
  %65 = vmatmul.f32.gmra.mxu0 %v27
  %v66 = vpop.f32.mrf.mxu0
  %v67 = vadd.f32 0.0, %v66
  %68 = vmatmul.f32.gmra.mxu0 %v28
  %v69 = vpop.f32.mrf.mxu0
  %v70 = vadd.f32 0.0, %v69
  %71 = vmatmul.f32.gmra.mxu0 %v29
  %v72 = vpop.f32.mrf.mxu0
  %v73 = vadd.f32 0.0, %v72
  %74 = vdwg.mxu0
  %v75 = vld [vmem:[%s0] sm:$0xff]
  %v76 = vld [vmem:[%s0 + $0x8] sm:$0xff]
  %v77 = vld [vmem:[%s0 + $0x10] sm:$0xff]
  %v78 = vld [vmem:[%s0 + $0x18] sm:$0xff]
  %v79 = vld [vmem:[%s3] sm:$0x1]
  %v81 = vperm.slane %v79, 0
  %vm83 = vcmask 261120
  %v85 = vsel %vm83, %v75, 0
  %v88 = vsel %vm83, %v76, 0
  %v91 = vsel %vm83, %v77, 0
  %v94 = vsel %vm83, %v78, 0
  %96 = vmatpush.msra.mxu0 0.0
  %97 = vmatpush.msra.mxu0 0.0
  %98 = vmatpush.msra.mxu0 0.0
  %99 = vmatpush.msra.mxu0 0.0
  %100 = vmatpush.msra.mxu0 0.0
  %101 = vmatpush.msra.mxu0 0.0
  %102 = vmatpush.msra.mxu0 0.0
  %103 = vmatpush.msra.mxu0 0.0
  %104 = vmatpush.msra.mxu0 0.0
  %105 = vmatpush.msra.mxu0 0.0
  %106 = vmatpush.msra.mxu0 0.0
  %107 = vmatpush.msra.mxu0 0.0
  %108 = vmatpush.msra.mxu0 %v73
  %109 = vmatpush.msra.mxu0 %v70
  %110 = vmatpush.msra.mxu0 %v67
  %111 = vmatpush.msra.mxu0 %v64
  %112 = vmatmul.f32.gmra.mxu0 %v85
  %v113 = vpop.f32.mrf.mxu0
  %v114 = vadd.f32 %v81, %v113
  %115 = vmatmul.f32.gmra.mxu0 %v88
  %v116 = vpop.f32.mrf.mxu0
  %v117 = vadd.f32 %v81, %v116
  %118 = vmatmul.f32.gmra.mxu0 %v91
  %v119 = vpop.f32.mrf.mxu0
  %v120 = vadd.f32 %v81, %v119
  %121 = vmatmul.f32.gmra.mxu0 %v94
  %v122 = vpop.f32.mrf.mxu0
  %v123 = vadd.f32 %v81, %v122
  %124 = vdwg.mxu0
  %v125 = vmax.f32 %v114, 0.0
  %v126 = vmax.f32 %v117, 0.0
  %v127 = vmax.f32 %v120, 0.0
  %v128 = vmax.f32 %v123, 0.0
  %v129 = vld [vmem:[%s4] sm:$0xff]
  %v130 = vld [vmem:[%s4 + $0x8] sm:$0xff]
  %v131 = vld [vmem:[%s4 + $0x10] sm:$0xff]
  %v132 = vld [vmem:[%s4 + $0x18] sm:$0xff]
  %v133 = vmul.f32 %v125, %v129
  %v134 = vmul.f32 %v126, %v130
  %v135 = vmul.f32 %v127, %v131
  %v136 = vmul.f32 %v128, %v132
  %v137 = vld [vmem:[%s5] sm:$0xff]
  %v138 = vld [vmem:[%s5 + $0x8] sm:$0xff]
  %v139 = vld [vmem:[%s5 + $0x10] sm:$0xff]
  %v140 = vld [vmem:[%s5 + $0x18] sm:$0xff]
  %v141 = vld [vmem:[%s5 + $0x20] sm:$0xff]
  %v142 = vld [vmem:[%s5 + $0x28] sm:$0xff]
  %v143 = vld [vmem:[%s5 + $0x30] sm:$0xff]
  %v144 = vld [vmem:[%s5 + $0x38] sm:$0xff]
  %v145 = vld [vmem:[%s5 + $0x40] sm:$0xff]
  %v146 = vld [vmem:[%s5 + $0x48] sm:$0xff]
  %v147 = vld [vmem:[%s5 + $0x50] sm:$0xff]
  %v148 = vld [vmem:[%s5 + $0x58] sm:$0xff]
  %v149 = vld [vmem:[%s5 + $0x60] sm:$0xff]
  %v150 = vld [vmem:[%s5 + $0x68] sm:$0xff]
  %v151 = vld [vmem:[%s5 + $0x70] sm:$0xff]
  %v152 = vld [vmem:[%s5 + $0x78] sm:$0xff]
  %153 = vmatpush.msra.mxu0 %v152
  %154 = vmatpush.msra.mxu0 %v151
  %155 = vmatpush.msra.mxu0 %v150
  %156 = vmatpush.msra.mxu0 %v149
  %157 = vmatpush.msra.mxu0 %v148
  %158 = vmatpush.msra.mxu0 %v147
  %159 = vmatpush.msra.mxu0 %v146
  %160 = vmatpush.msra.mxu0 %v145
  %161 = vmatpush.msra.mxu0 %v144
  %162 = vmatpush.msra.mxu0 %v143
  %163 = vmatpush.msra.mxu0 %v142
  %164 = vmatpush.msra.mxu0 %v141
  %165 = vmatpush.msra.mxu0 %v140
  %166 = vmatpush.msra.mxu0 %v139
  %167 = vmatpush.msra.mxu0 %v138
  %168 = vmatpush.msra.mxu0 %v137
  %169 = vmatmul.f32.gmra.mxu0 %v133
  %v170 = vpop.f32.mrf.mxu0
  %v171 = vadd.f32 0.0, %v170
  %172 = vmatmul.f32.gmra.mxu0 %v134
  %v173 = vpop.f32.mrf.mxu0
  %v174 = vadd.f32 0.0, %v173
  %175 = vmatmul.f32.gmra.mxu0 %v135
  %v176 = vpop.f32.mrf.mxu0
  %v177 = vadd.f32 0.0, %v176
  %178 = vmatmul.f32.gmra.mxu0 %v136
  %v179 = vpop.f32.mrf.mxu0
  %v180 = vadd.f32 0.0, %v179
  %181 = vdwg.mxu0
  %v182 = vld [vmem:[%s6] sm:$0x1]
  %v184 = vperm.slane %v182, 0
  %186 = vmatpush.msra.mxu0 0.0
  %187 = vmatpush.msra.mxu0 0.0
  %188 = vmatpush.msra.mxu0 0.0
  %189 = vmatpush.msra.mxu0 0.0
  %190 = vmatpush.msra.mxu0 0.0
  %191 = vmatpush.msra.mxu0 0.0
  %192 = vmatpush.msra.mxu0 0.0
  %193 = vmatpush.msra.mxu0 0.0
  %194 = vmatpush.msra.mxu0 0.0
  %195 = vmatpush.msra.mxu0 0.0
  %196 = vmatpush.msra.mxu0 0.0
  %197 = vmatpush.msra.mxu0 0.0
  %198 = vmatpush.msra.mxu0 %v180
  %199 = vmatpush.msra.mxu0 %v177
  %200 = vmatpush.msra.mxu0 %v174
  %201 = vmatpush.msra.mxu0 %v171
  %202 = vmatmul.f32.gmra.mxu0 %v85
  %v203 = vpop.f32.mrf.mxu0
  %v204 = vadd.f32 %v184, %v203
  %205 = vmatmul.f32.gmra.mxu0 %v88
  %v206 = vpop.f32.mrf.mxu0
  %v207 = vadd.f32 %v184, %v206
  %208 = vmatmul.f32.gmra.mxu0 %v91
  %v209 = vpop.f32.mrf.mxu0
  %v210 = vadd.f32 %v184, %v209
  %211 = vmatmul.f32.gmra.mxu0 %v94
  %v212 = vpop.f32.mrf.mxu0
  %v213 = vadd.f32 %v184, %v212
  %214 = vdwg.mxu0
  %v215 = vxor.u32 %v204, 2147483648
  %v216 = vxor.u32 %v207, 2147483648
  %v217 = vxor.u32 %v210, 2147483648
  %v218 = vxor.u32 %v213, 2147483648
  %v219 = vmul.f32 %v215, 1.442695
  %v220 = vpow.pop %v219
  %v221 = vmul.f32 %v216, 1.442695
  %v222 = vpow.pop %v221
  %v223 = vmul.f32 %v217, 1.442695
  %v224 = vpow.pop %v223
  %v225 = vmul.f32 %v218, 1.442695
  %v226 = vpow.pop %v225
  %v227 = vadd.f32 %v220, 1.0
  %v228 = vadd.f32 %v222, 1.0
  %v229 = vadd.f32 %v224, 1.0
  %v230 = vadd.f32 %v226, 1.0
  %v231 = vrcp.pop %v227
  %v232 = vmul.f32 %v227, %v231
  %v233 = vsub.f32 1.0, %v232
  %v234 = vmul.f32 %v231, %v233
  %v235 = vadd.f32 %v231, %v234
  %vm236 = vweird.f32 %v227
  %vm237 = vweird.f32 %v231
  %vm238 = vmor %vm236, %vm237
  %v239 = vsel %vm238, %v231, %v235
  %v240 = vand.u32 2147483647, %v227
  %vm241 = vcmp.eq.f32.partialorder %v240, 8.507059e+37
  %v242 = vand.u32 %v227, 2147483648
  %v243 = vor.u32 1.1754944e-38, %v242
  %v244 = vsel %vm241, %v243, %v239
  %v245 = vmul.f32 1.0, %v244
  %v246 = vrcp.pop %v228
  %v247 = vmul.f32 %v228, %v246
  %v248 = vsub.f32 1.0, %v247
  %v249 = vmul.f32 %v246, %v248
  %v250 = vadd.f32 %v246, %v249
  %vm251 = vweird.f32 %v228
  %vm252 = vweird.f32 %v246
  %vm253 = vmor %vm251, %vm252
  %v254 = vsel %vm253, %v246, %v250
  %v255 = vand.u32 2147483647, %v228
  %vm256 = vcmp.eq.f32.partialorder %v255, 8.507059e+37
  %v257 = vand.u32 %v228, 2147483648
  %v258 = vor.u32 1.1754944e-38, %v257
  %v259 = vsel %vm256, %v258, %v254
  %v260 = vmul.f32 1.0, %v259
  %v261 = vrcp.pop %v229
  %v262 = vmul.f32 %v229, %v261
  %v263 = vsub.f32 1.0, %v262
  %v264 = vmul.f32 %v261, %v263
  %v265 = vadd.f32 %v261, %v264
  %vm266 = vweird.f32 %v229
  %vm267 = vweird.f32 %v261
  %vm268 = vmor %vm266, %vm267
  %v269 = vsel %vm268, %v261, %v265
  %v270 = vand.u32 2147483647, %v229
  %vm271 = vcmp.eq.f32.partialorder %v270, 8.507059e+37
  %v272 = vand.u32 %v229, 2147483648
  %v273 = vor.u32 1.1754944e-38, %v272
  %v274 = vsel %vm271, %v273, %v269
  %v275 = vmul.f32 1.0, %v274
  %v276 = vrcp.pop %v230
  %v277 = vmul.f32 %v230, %v276
  %v278 = vsub.f32 1.0, %v277
  %v279 = vmul.f32 %v276, %v278
  %v280 = vadd.f32 %v276, %v279
  %vm281 = vweird.f32 %v230
  %vm282 = vweird.f32 %v276
  %vm283 = vmor %vm281, %vm282
  %v284 = vsel %vm283, %v276, %v280
  %v285 = vand.u32 2147483647, %v230
  %vm286 = vcmp.eq.f32.partialorder %v285, 8.507059e+37
  %v287 = vand.u32 %v230, 2147483648
  %v288 = vor.u32 1.1754944e-38, %v287
  %v289 = vsel %vm286, %v288, %v284
  %v290 = vmul.f32 1.0, %v289
  %291 = vst [vmem:[%s7] sm:$0xff] %v245
  %292 = vst [vmem:[%s7 + $0x8] sm:$0xff] %v260
  %293 = vst [vmem:[%s7 + $0x10] sm:$0xff] %v275
  %294 = vst [vmem:[%s7 + $0x18] sm:$0xff] %v290
  // Predicated region
  $region30: #{gcn_2l_forward.1} parent=0 // pred_check
    _
  $region31: #{gcn_2l_forward.1} parent=0 // pred_check_branch
    %296 = sbr.rel (0) target = $region33
  $region32: #{gcn_2l_forward.1} parent=0 // pred_region
    _
  $region33: #{gcn_2l_forward.1} parent=0 // pred_fallthru
    _
  // Predicated region
  $region34: #{gcn_2l_forward.1} parent=0 // pred_check
    _
  $region35: #{gcn_2l_forward.1} parent=0 // pred_check_branch
    %298 = sbr.rel (0) target = $region37
  $region36: #{gcn_2l_forward.1} parent=0 // pred_region
    _
  $region37: #{gcn_2l_forward.1} parent=0 // pred_fallthru
    _

</llo_original>
